<compile_context>
chip_gen: v6e
topology: v6e:2x2x1
jax: 0.10.0
libtpu: 0.0.40
codegen_flags: <defaults>
</compile_context>

<pallas_src>
import functools

import jax
import jax.numpy as jnp
from jax import lax
from jax.experimental import pallas as pl
from jax.experimental.pallas import tpu as pltpu


def _round_up(a, m):
    return (a + m - 1) // m * m


# ----------------------------------------------------------------------------
# Fused kernel: one batch sample per grid step.
# ----------------------------------------------------------------------------
def _depth_wise_kernel(x_ref, w1_ref, ba_ref, wdw_ref, sel_ref, w3_ref, b3_ref,
                       o_ref, ypad_ref, *,
                       H, W, kh, kw, ph, pw, center_off, apply_stride):
    G = ba_ref.shape[0]
    HW = H * W
    pad_lo = ph * W + pw                          # lanes read before interior
    pad_hi = (kh - 1 - ph) * W + (kw - 1 - pw)    # lanes read after interior

    # ---- stage 1: 1x1 conv (Cin -> G); BN scale pre-folded into w1 ----------
    y1 = jnp.dot(w1_ref[...], x_ref[0], preferred_element_type=jnp.float32)
    y1 = y1 + ba_ref[:, 0:1]                                   # folded BN bias
    y1 = jnp.where(y1 >= 0.0, y1, y1 * ba_ref[:, 1:2])         # PReLU

    # ---- margin-only zeroing (every step; scratch is per-core) --------------
    if pad_lo > 0:
        ypad_ref[:, center_off - pad_lo:center_off] = jnp.zeros(
            (G, pad_lo), jnp.float32)
    if pad_hi > 0:
        ypad_ref[:, center_off + HW:center_off + HW + pad_hi] = jnp.zeros(
            (G, pad_hi), jnp.float32)
    # 128-aligned interior store (center_off % 128 == 0, static offset)
    ypad_ref[:, center_off:center_off + HW] = y1

    # ---- stage 2: depthwise kh x kw at stride 1; taps are static lane slices
    #      of the zero-padded flat scratch (stays in VMEM) --------------------
    col = lax.broadcasted_iota(jnp.int32, (1, HW), 1) % W      # flat column idx
    col_ok = {}
    for dw in range(kw):                                       # hoisted masks
        s = dw - pw
        if s != 0 and s not in col_ok:
            col_ok[s] = (col + s >= 0) & (col + s < W)

    acc = None
    for dh in range(kh):                                       # unrolled FMA
        for dw in range(kw):
            t = dh * kw + dw
            off = center_off + (dh - ph) * W + (dw - pw)
            src = ypad_ref[:, off:off + HW]                    # (G, HW)
            s = dw - pw
            if s != 0:                                         # W-boundary zeros
                src = jnp.where(col_ok[s], src, 0.0)
            term = src * wdw_ref[:, t:t + 1]                   # BN2 scale folded
            acc = term if acc is None else acc + term
    acc = acc + ba_ref[:, 2:3]                                 # folded BN bias
    acc = jnp.where(acc >= 0.0, acc, acc * ba_ref[:, 3:4])     # PReLU

    # ---- fold in the (sh, sw) stride: ONE lane-dense MXU selection matmul ---
    if apply_stride:
        y2 = jnp.dot(acc, sel_ref[...], preferred_element_type=jnp.float32)
    else:
        y2 = acc                                               # stride (1,1)

    # ---- stage 3: 1x1 projection (G -> Cout) + folded BN ---------------------
    y3 = jnp.dot(w3_ref[...], y2.astype(w3_ref.dtype),
                 preferred_element_type=jnp.float32) + b3_ref[...]
    o_ref[0] = y3.astype(o_ref.dtype)


# ----------------------------------------------------------------------------
# Wrapper: BN folding, weight layout prep, pallas_call.
# ----------------------------------------------------------------------------
def _bn_fold(gamma, beta, mean, var, eps=1e-5):
    scale = gamma / jnp.sqrt(var + eps)
    return scale, beta - mean * scale


def depth_wise_forward(x_nchw, p, *, kernel=(3, 3), stride=(2, 2),
                       padding=(1, 1), residual=False, mxu_dtype=jnp.float32):
    N, Cin, H, W = x_nchw.shape
    kh, kw = kernel
    sh, sw = stride
    ph, pw = padding
    G = p["w1"].shape[1]
    Cout = p["w3"].shape[1]
    Ho = (H + 2 * ph - kh) // sh + 1
    Wo = (W + 2 * pw - kw) // sw + 1
    HW, HoWo = H * W, Ho * Wo
    f32 = jnp.float32

    if not (kh >= 2 * ph + 1 and kw >= 2 * pw + 1):
        raise ValueError("flat-padded layout requires kernel >= 2*padding + 1 "
                         f"(got kernel={kernel}, padding={padding})")
    if residual and (stride != (1, 1) or Cout != Cin):
        raise ValueError("residual add requires stride=(1,1) and out_c == in_c")

    # fold BN scale into the conv weights; only bias (+ PReLU alpha) remain
    s1, b1 = _bn_fold(p["bn1_gamma"], p["bn1_beta"], p["bn1_mean"], p["bn1_var"])
    s2, b2 = _bn_fold(p["bn2_gamma"], p["bn2_beta"], p["bn2_mean"], p["bn2_var"])
    s3, b3 = _bn_fold(p["bn3_gamma"], p["bn3_beta"], p["bn3_mean"], p["bn3_var"])
    w1s = (p["w1"] * s1[None, :]).T.astype(mxu_dtype)                    # (G, Cin)
    wdws = (p["w_dw"].reshape(kh * kw, G) * s2[None, :]).T.astype(f32)   # (G, kh*kw)
    w3s = (p["w3"] * s3[None, :]).T.astype(mxu_dtype)                    # (Cout, G)
    ba = jnp.stack([b1, p["alpha1"], b2, p["alpha2"]], axis=1).astype(f32)  # (G, 4)
    b3c = b3.reshape(Cout, 1).astype(f32)

    # flat (HW -> HoWo) stride/crop selection matrix (one MXU op in-kernel)
    apply_stride = not (Ho == H and Wo == W)
    if apply_stride:
        q = jnp.arange(HoWo)
        src_pos = (q // Wo) * (sh * W) + (q % Wo) * sw
        sel = (jnp.arange(HW)[:, None] == src_pos[None, :]).astype(f32)  # (HW, HoWo)
    else:
        sel = jnp.zeros((8, 128), f32)          # placeholder, unused in-kernel

    # channels-first flat layout (C, H*W): spatial axis on the 128 lanes
    x3 = x_nchw.reshape(N, Cin, HW).astype(mxu_dtype)
    itemsize = x3.dtype.itemsize

    pad_lo = ph * W + pw
    pad_hi = (kh - 1 - ph) * W + (kw - 1 - pw)
    center_off = _round_up(pad_lo, 128)         # 128-lane-aligned interior
    L = center_off + HW + pad_hi

    kern = functools.partial(_depth_wise_kernel, H=H, W=W, kh=kh, kw=kw,
                             ph=ph, pw=pw, center_off=center_off,
                             apply_stride=apply_stride)

    # VMEM budget computed from the actual sizes (cap 64 MiB: safe on v7x too)
    weight_bytes = ((w1s.size + w3s.size) * itemsize
                    + (wdws.size + ba.size + b3c.size + sel.size) * 4)
    block_bytes = Cin * HW * itemsize + Cout * HoWo * 4
    scratch_bytes = G * L * 4
    temp_bytes = 8 * G * HW * 4                 # y1 / acc / tap-slice headroom
    vmem_limit = int(min(max(2 * (2 * block_bytes + weight_bytes
                                  + scratch_bytes + temp_bytes),
                             16 * 1024 * 1024), 64 * 1024 * 1024))

    flops = N * (2 * G * Cin * HW + 2 * G * HW * kh * kw
                 + (2 * G * HW * HoWo if apply_stride else 0)
                 + 2 * Cout * G * HoWo)
    bytes_accessed = x3.size * itemsize + N * Cout * HoWo * 4 + weight_bytes
    cost = pl.CostEstimate(flops=flops, transcendentals=0,
                           bytes_accessed=bytes_accessed)

    out = pl.pallas_call(
        kern,
        out_shape=jax.ShapeDtypeStruct((N, Cout, HoWo), f32),
        grid_spec=pltpu.PrefetchScalarGridSpec(
            num_scalar_prefetch=0,
            grid=(N,),
            in_specs=[
                pl.BlockSpec((1, Cin, HW), lambda n: (n, 0, 0)),
                pl.BlockSpec(w1s.shape, lambda n: (0, 0)),
                pl.BlockSpec(ba.shape, lambda n: (0, 0)),
                pl.BlockSpec(wdws.shape, lambda n: (0, 0)),
                pl.BlockSpec(sel.shape, lambda n: (0, 0)),
                pl.BlockSpec(w3s.shape, lambda n: (0, 0)),
                pl.BlockSpec(b3c.shape, lambda n: (0, 0)),
            ],
            out_specs=pl.BlockSpec((1, Cout, HoWo), lambda n: (n, 0, 0)),
            scratch_shapes=[pltpu.VMEM((G, L), f32)],   # zero-padded y1
        ),
        compiler_params=pltpu.CompilerParams(
            dimension_semantics=("parallel",),
            vmem_limit_bytes=vmem_limit,
        ),
        cost_estimate=cost,
    )(x3, w1s, ba, wdws, sel, w3s, b3c)

    out = out.reshape(N, Cout, Ho, Wo)          # already NCHW
    if residual:
        out = x_nchw.astype(out.dtype) + out
    return out


# ----------------------------------------------------------------------------
# Pure-JAX reference (correctness check) and deterministic init
# ----------------------------------------------------------------------------
def _ref_forward(x_nchw, p, kernel, stride, padding, residual):
    dn = ("NHWC", "HWIO", "NHWC")
    eps = 1e-5

    def bn(y, g, b, m, v):
        return (y - m) / jnp.sqrt(v + eps) * g + b

    def prelu(y, a):
        return jnp.where(y >= 0.0, y, a * y)

    x = jnp.transpose(x_nchw, (0, 2, 3, 1)).astype(jnp.float32)
    G = p["w1"].shape[1]
    y = lax.conv_general_dilated(x, p["w1"].reshape(1, 1, *p["w1"].shape),
                                 (1, 1), "VALID", dimension_numbers=dn)
    y = prelu(bn(y, p["bn1_gamma"], p["bn1_beta"], p["bn1_mean"], p["bn1_var"]),
              p["alpha1"])
    y = lax.conv_general_dilated(
        y, p["w_dw"].reshape(kernel[0], kernel[1], 1, G), stride,
        [(padding[0], padding[0]), (padding[1], padding[1])],
        dimension_numbers=dn, feature_group_count=G)
    y = prelu(bn(y, p["bn2_gamma"], p["bn2_beta"], p["bn2_mean"], p["bn2_var"]),
              p["alpha2"])
    y = lax.conv_general_dilated(y, p["w3"].reshape(1, 1, *p["w3"].shape),
                                 (1, 1), "VALID", dimension_numbers=dn)
    y = bn(y, p["bn3_gamma"], p["bn3_beta"], p["bn3_mean"], p["bn3_var"])
    out = jnp.transpose(y, (0, 3, 1, 2))
    if residual:
        out = x_nchw + out
    return out


def init_params(key, in_c, out_c, groups, kernel=(3, 3)):
    ks = jax.random.split(key, 16)
    f32 = jnp.float32

    def bn_params(k, c):
        k1, k2, k3, k4 = jax.random.split(k, 4)
        return (1.0 + 0.1 * jax.random.normal(k1, (c,), f32),
                0.1 * jax.random.normal(k2, (c,), f32),
                0.1 * jax.random.normal(k3, (c,), f32),
                1.0 + 0.1 * jnp.abs(jax.random.normal(k4, (c,), f32)))

    p = {}
    p["w1"] = 0.2 * jax.random.normal(ks[0], (in_c, groups), f32)
    p["bn1_gamma"], p["bn1_beta"], p["bn1_mean"], p["bn1_var"] = bn_params(ks[1], groups)
    p["alpha1"] = 0.25 * jnp.ones((groups,), f32)            # PyTorch PReLU default
    p["w_dw"] = 0.2 * jax.random.normal(ks[2], (kernel[0], kernel[1], groups), f32)
    p["bn2_gamma"], p["bn2_beta"], p["bn2_mean"], p["bn2_var"] = bn_params(ks[3], groups)
    p["alpha2"] = 0.25 * jnp.ones((groups,), f32)
    p["w3"] = 0.2 * jax.random.normal(ks[4], (groups, out_c), f32)
    p["bn3_gamma"], p["bn3_beta"], p["bn3_mean"], p["bn3_var"] = bn_params(ks[5], out_c)
    return p


if __name__ == "__main__":
    key = jax.random.PRNGKey(0)
    kx, kp, kb = jax.random.split(key, 3)

    # --- config A: Depth_Wise(4, 8, groups=8, kernel=(3,3), stride=(2,2)) ----
    in_c, out_c, groups = 4, 8, 8
    N, H, W = 2, 16, 16
    kernel, stride, padding = (3, 3), (2, 2), (1, 1)
    x = jax.random.normal(kx, (N, in_c, H, W), jnp.float32)
    params = init_params(kp, in_c, out_c, groups, kernel)

    out = depth_wise_forward(x, params, kernel=kernel, stride=stride,
                             padding=padding, residual=False)
    out = jax.block_until_ready(out)
    ref = _ref_forward(x, params, kernel, stride, padding, False)
    assert out.shape == (N, out_c, H // 2, W // 2), out.shape
    err = float(jnp.max(jnp.abs(out - ref)))
    assert jnp.allclose(out, ref, atol=2e-4, rtol=2e-4), f"f32 stride-2 err={err}"

    # --- config A with bf16 MXU operands (v6e/v7x recommendation) ------------
    out_bf = depth_wise_forward(x, params, kernel=kernel, stride=stride,
                                padding=padding, residual=False,
                                mxu_dtype=jnp.bfloat16)
    out_bf = jax.block_until_ready(out_bf)
    err_bf = float(jnp.max(jnp.abs(out_bf - ref)))
    assert jnp.allclose(out_bf, ref, atol=1e-1, rtol=0.0), f"bf16 err={err_bf}"

    # --- config B: residual / stride-(1,1) variant ----------------------------
    in_c2 = out_c2 = 8
    groups2 = 16
    N2, H2, W2 = 2, 8, 8
    kx2, kp2 = jax.random.split(kb)
    x2 = jax.random.normal(kx2, (N2, in_c2, H2, W2), jnp.float32)
    params2 = init_params(kp2, in_c2, out_c2, groups2, (3, 3))
    out2 = depth_wise_forward(x2, params2, kernel=(3, 3), stride=(1, 1),
                              padding=(1, 1), residual=True)
    out2 = jax.block_until_ready(out2)
    ref2 = _ref_forward(x2, params2, (3, 3), (1, 1), (1, 1), True)
    assert out2.shape == (N2, out_c2, H2, W2), out2.shape
    err2 = float(jnp.max(jnp.abs(out2 - ref2)))
    assert jnp.allclose(out2, ref2, atol=2e-4, rtol=2e-4), f"f32 residual err={err2}"

    print("KERNEL_OK")
</pallas_src>

<mosaic_0001>
module attributes {stable_mosaic.version = 11 : i64} {
  func.func @_depth_wise_kernel(%arg0: i32, %arg1: memref<1x4x256xf32, #tpu.memory_space<vmem>>, %arg2: memref<8x4xf32, #tpu.memory_space<vmem>>, %arg3: memref<8x4xf32, #tpu.memory_space<vmem>>, %arg4: memref<8x9xf32, #tpu.memory_space<vmem>>, %arg5: memref<256x64xf32, #tpu.memory_space<vmem>>, %arg6: memref<8x8xf32, #tpu.memory_space<vmem>>, %arg7: memref<8x1xf32, #tpu.memory_space<vmem>>, %arg8: memref<1x8x64xf32, #tpu.memory_space<vmem>>, %arg9: memref<8x401xf32, #tpu.memory_space<vmem>>) attributes {dimension_semantics = [#tpu.dimension_semantics<parallel>], iteration_bounds = array<i64: 2>, scalar_prefetch = 0 : i64, scratch_operands = 1 : i64, tpu.core_type = #tpu.core_type<tc>, window_params = [{transform_indices = @transform_0, window_bounds = array<i64: 1, 4, 256>}, {pipeline_mode = #tpu.pipeline_mode<synchronous>, transform_indices = @transform_1, window_bounds = array<i64: 8, 4>}, {pipeline_mode = #tpu.pipeline_mode<synchronous>, transform_indices = @transform_2, window_bounds = array<i64: 8, 4>}, {pipeline_mode = #tpu.pipeline_mode<synchronous>, transform_indices = @transform_3, window_bounds = array<i64: 8, 9>}, {pipeline_mode = #tpu.pipeline_mode<synchronous>, transform_indices = @transform_4, window_bounds = array<i64: 256, 64>}, {pipeline_mode = #tpu.pipeline_mode<synchronous>, transform_indices = @transform_5, window_bounds = array<i64: 8, 8>}, {pipeline_mode = #tpu.pipeline_mode<synchronous>, transform_indices = @transform_6, window_bounds = array<i64: 8, 1>}, {transform_indices = @transform_7, window_bounds = array<i64: 1, 8, 64>}]} {
    %c0 = arith.constant 0 : index
    %c0_0 = arith.constant 0 : index
    %0 = vector.load %arg2[%c0, %c0_0] : memref<8x4xf32, #tpu.memory_space<vmem>>, vector<8x4xf32>
    %c0_1 = arith.constant 0 : index
    %c0_2 = arith.constant 0 : index
    %c0_3 = arith.constant 0 : index
    %1 = vector.load %arg1[%c0_1, %c0_2, %c0_3] : memref<1x4x256xf32, #tpu.memory_space<vmem>>, vector<1x4x256xf32>
    %2 = vector.shape_cast %1 : vector<1x4x256xf32> to vector<4x256xf32>
    %cst = arith.constant dense<0.000000e+00> : vector<8x256xf32>
    %3 = tpu.matmul %0, %2, %cst {dimension_numbers = #tpu.dot_dimension_numbers<[1], [0], [0], [1], [0, 0, 1, 1], [], []>} : vector<8x4xf32>, vector<4x256xf32>, vector<8x256xf32> -> vector<8x256xf32>
    %c0_4 = arith.constant 0 : index
    %c0_5 = arith.constant 0 : index
    %4 = vector.load %arg3[%c0_4, %c0_5] : memref<8x4xf32, #tpu.memory_space<vmem>>, vector<8x1xf32>
    %5 = vector.broadcast %4 : vector<8x1xf32> to vector<8x256xf32>
    %6 = arith.addf %3, %5 : vector<8x256xf32>
    %cst_6 = arith.constant 0.000000e+00 : f32
    %7 = vector.broadcast %cst_6 : f32 to vector<8x256xf32>
    %8 = arith.cmpf oge, %6, %7 : vector<8x256xf32>
    %c0_7 = arith.constant 0 : index
    %c1 = arith.constant 1 : index
    %9 = vector.load %arg3[%c0_7, %c1] : memref<8x4xf32, #tpu.memory_space<vmem>>, vector<8x1xf32>
    %10 = vector.broadcast %9 : vector<8x1xf32> to vector<8x256xf32>
    %11 = arith.mulf %6, %10 : vector<8x256xf32>
    %12 = arith.select %8, %6, %11 : vector<8x256xi1>, vector<8x256xf32>
    %cst_8 = arith.constant 0.000000e+00 : f32
    %13 = vector.broadcast %cst_8 : f32 to vector<8x17xf32>
    %c0_9 = arith.constant 0 : index
    %c111 = arith.constant 111 : index
    %14 = vector.load %arg9[%c0_9, %c111] : memref<8x401xf32, #tpu.memory_space<vmem>>, vector<8x17xf32>
    tpu.vector_store %arg9[%c0_9, %c111], %13 {strides = array<i32>} : memref<8x401xf32, #tpu.memory_space<vmem>>, vector<8x17xf32>,
    %cst_10 = arith.constant 0.000000e+00 : f32
    %15 = vector.broadcast %cst_10 : f32 to vector<8x17xf32>
    %c0_11 = arith.constant 0 : index
    %c384 = arith.constant 384 : index
    %16 = vector.load %arg9[%c0_11, %c384] : memref<8x401xf32, #tpu.memory_space<vmem>>, vector<8x17xf32>
    tpu.vector_store %arg9[%c0_11, %c384], %15 {strides = array<i32>} : memref<8x401xf32, #tpu.memory_space<vmem>>, vector<8x17xf32>,
    %c0_12 = arith.constant 0 : index
    %c128 = arith.constant 128 : index
    %17 = vector.load %arg9[%c0_12, %c128] : memref<8x401xf32, #tpu.memory_space<vmem>>, vector<8x256xf32>
    tpu.vector_store %arg9[%c0_12, %c128], %12 {strides = array<i32>} : memref<8x401xf32, #tpu.memory_space<vmem>>, vector<8x256xf32>,
    %18 = tpu.iota {dimensions = array<i32: 1>} : vector<1x256xi32>
    %c16_i32 = arith.constant 16 : i32
    %c0_i32 = arith.constant 0 : i32
    %19 = arith.cmpi eq, %c16_i32, %c0_i32 : i32
    %c1_i32 = arith.constant 1 : i32
    %20 = arith.select %19, %c1_i32, %c16_i32 : i32
    %21 = vector.broadcast %20 : i32 to vector<1x256xi32>
    %22 = arith.remsi %18, %21 : vector<1x256xi32>
    %c0_i32_13 = arith.constant 0 : i32
    %23 = vector.broadcast %c0_i32_13 : i32 to vector<1x256xi32>
    %24 = arith.cmpi ne, %22, %23 : vector<1x256xi32>
    %c0_i32_14 = arith.constant 0 : i32
    %25 = vector.broadcast %c0_i32_14 : i32 to vector<1x256xi32>
    %26 = arith.cmpi slt, %22, %25 : vector<1x256xi32>
    %c0_i32_15 = arith.constant 0 : i32
    %27 = arith.cmpi slt, %20, %c0_i32_15 : i32
    %28 = vector.broadcast %27 : i1 to vector<1x256xi1>
    %29 = vector.broadcast %28 : vector<1x256xi1> to vector<1x256xi1>
    %30 = arith.xori %26, %29 : vector<1x256xi1>
    %31 = arith.andi %30, %24 : vector<1x256xi1>
    %32 = vector.broadcast %20 : i32 to vector<1x256xi32>
    %33 = arith.addi %22, %32 : vector<1x256xi32>
    %34 = arith.select %31, %33, %22 : vector<1x256xi1>, vector<1x256xi32>
    %c-1_i32 = arith.constant -1 : i32
    %35 = vector.broadcast %c-1_i32 : i32 to vector<1x256xi32>
    %36 = arith.addi %34, %35 : vector<1x256xi32>
    %c0_i32_16 = arith.constant 0 : i32
    %37 = vector.broadcast %c0_i32_16 : i32 to vector<1x256xi32>
    %38 = arith.cmpi sge, %36, %37 : vector<1x256xi32>
    %c-1_i32_17 = arith.constant -1 : i32
    %39 = vector.broadcast %c-1_i32_17 : i32 to vector<1x256xi32>
    %40 = arith.addi %34, %39 : vector<1x256xi32>
    %c16_i32_18 = arith.constant 16 : i32
    %41 = vector.broadcast %c16_i32_18 : i32 to vector<1x256xi32>
    %42 = arith.cmpi slt, %40, %41 : vector<1x256xi32>
    %43 = arith.andi %38, %42 : vector<1x256xi1>
    %c1_i32_19 = arith.constant 1 : i32
    %44 = vector.broadcast %c1_i32_19 : i32 to vector<1x256xi32>
    %45 = arith.addi %34, %44 : vector<1x256xi32>
    %c0_i32_20 = arith.constant 0 : i32
    %46 = vector.broadcast %c0_i32_20 : i32 to vector<1x256xi32>
    %47 = arith.cmpi sge, %45, %46 : vector<1x256xi32>
    %c1_i32_21 = arith.constant 1 : i32
    %48 = vector.broadcast %c1_i32_21 : i32 to vector<1x256xi32>
    %49 = arith.addi %34, %48 : vector<1x256xi32>
    %c16_i32_22 = arith.constant 16 : i32
    %50 = vector.broadcast %c16_i32_22 : i32 to vector<1x256xi32>
    %51 = arith.cmpi slt, %49, %50 : vector<1x256xi32>
    %52 = arith.andi %47, %51 : vector<1x256xi1>
    %c0_23 = arith.constant 0 : index
    %c111_24 = arith.constant 111 : index
    %53 = vector.load %arg9[%c0_23, %c111_24] : memref<8x401xf32, #tpu.memory_space<vmem>>, vector<8x256xf32>
    %cst_25 = arith.constant 0.000000e+00 : f32
    %54 = vector.shape_cast %43 : vector<1x256xi1> to vector<1x256xi1>
    %55 = vector.broadcast %54 : vector<1x256xi1> to vector<8x256xi1>
    %56 = vector.broadcast %cst_25 : f32 to vector<8x256xf32>
    %57 = arith.select %55, %53, %56 : vector<8x256xi1>, vector<8x256xf32>
    %c0_26 = arith.constant 0 : index
    %c0_27 = arith.constant 0 : index
    %58 = vector.load %arg4[%c0_26, %c0_27] : memref<8x9xf32, #tpu.memory_space<vmem>>, vector<8x1xf32>
    %59 = vector.broadcast %58 : vector<8x1xf32> to vector<8x256xf32>
    %60 = arith.mulf %57, %59 : vector<8x256xf32>
    %c0_28 = arith.constant 0 : index
    %c112 = arith.constant 112 : index
    %61 = vector.load %arg9[%c0_28, %c112] : memref<8x401xf32, #tpu.memory_space<vmem>>, vector<8x256xf32>
    %c0_29 = arith.constant 0 : index
    %c1_30 = arith.constant 1 : index
    %62 = vector.load %arg4[%c0_29, %c1_30] : memref<8x9xf32, #tpu.memory_space<vmem>>, vector<8x1xf32>
    %63 = vector.broadcast %62 : vector<8x1xf32> to vector<8x256xf32>
    %64 = arith.mulf %61, %63 : vector<8x256xf32>
    %65 = arith.addf %60, %64 : vector<8x256xf32>
    %c0_31 = arith.constant 0 : index
    %c113 = arith.constant 113 : index
    %66 = vector.load %arg9[%c0_31, %c113] : memref<8x401xf32, #tpu.memory_space<vmem>>, vector<8x256xf32>
    %cst_32 = arith.constant 0.000000e+00 : f32
    %67 = vector.shape_cast %52 : vector<1x256xi1> to vector<1x256xi1>
    %68 = vector.broadcast %67 : vector<1x256xi1> to vector<8x256xi1>
    %69 = vector.broadcast %cst_32 : f32 to vector<8x256xf32>
    %70 = arith.select %68, %66, %69 : vector<8x256xi1>, vector<8x256xf32>
    %c0_33 = arith.constant 0 : index
    %c2 = arith.constant 2 : index
    %71 = vector.load %arg4[%c0_33, %c2] : memref<8x9xf32, #tpu.memory_space<vmem>>, vector<8x1xf32>
    %72 = vector.broadcast %71 : vector<8x1xf32> to vector<8x256xf32>
    %73 = arith.mulf %70, %72 : vector<8x256xf32>
    %74 = arith.addf %65, %73 : vector<8x256xf32>
    %c0_34 = arith.constant 0 : index
    %c127 = arith.constant 127 : index
    %75 = vector.load %arg9[%c0_34, %c127] : memref<8x401xf32, #tpu.memory_space<vmem>>, vector<8x256xf32>
    %cst_35 = arith.constant 0.000000e+00 : f32
    %76 = vector.shape_cast %43 : vector<1x256xi1> to vector<1x256xi1>
    %77 = vector.broadcast %76 : vector<1x256xi1> to vector<8x256xi1>
    %78 = vector.broadcast %cst_35 : f32 to vector<8x256xf32>
    %79 = arith.select %77, %75, %78 : vector<8x256xi1>, vector<8x256xf32>
    %c0_36 = arith.constant 0 : index
    %c3 = arith.constant 3 : index
    %80 = vector.load %arg4[%c0_36, %c3] : memref<8x9xf32, #tpu.memory_space<vmem>>, vector<8x1xf32>
    %81 = vector.broadcast %80 : vector<8x1xf32> to vector<8x256xf32>
    %82 = arith.mulf %79, %81 : vector<8x256xf32>
    %83 = arith.addf %74, %82 : vector<8x256xf32>
    %c0_37 = arith.constant 0 : index
    %c128_38 = arith.constant 128 : index
    %84 = vector.load %arg9[%c0_37, %c128_38] : memref<8x401xf32, #tpu.memory_space<vmem>>, vector<8x256xf32>
    %c0_39 = arith.constant 0 : index
    %c4 = arith.constant 4 : index
    %85 = vector.load %arg4[%c0_39, %c4] : memref<8x9xf32, #tpu.memory_space<vmem>>, vector<8x1xf32>
    %86 = vector.broadcast %85 : vector<8x1xf32> to vector<8x256xf32>
    %87 = arith.mulf %84, %86 : vector<8x256xf32>
    %88 = arith.addf %83, %87 : vector<8x256xf32>
    %c0_40 = arith.constant 0 : index
    %c129 = arith.constant 129 : index
    %89 = vector.load %arg9[%c0_40, %c129] : memref<8x401xf32, #tpu.memory_space<vmem>>, vector<8x256xf32>
    %cst_41 = arith.constant 0.000000e+00 : f32
    %90 = vector.shape_cast %52 : vector<1x256xi1> to vector<1x256xi1>
    %91 = vector.broadcast %90 : vector<1x256xi1> to vector<8x256xi1>
    %92 = vector.broadcast %cst_41 : f32 to vector<8x256xf32>
    %93 = arith.select %91, %89, %92 : vector<8x256xi1>, vector<8x256xf32>
    %c0_42 = arith.constant 0 : index
    %c5 = arith.constant 5 : index
    %94 = vector.load %arg4[%c0_42, %c5] : memref<8x9xf32, #tpu.memory_space<vmem>>, vector<8x1xf32>
    %95 = vector.broadcast %94 : vector<8x1xf32> to vector<8x256xf32>
    %96 = arith.mulf %93, %95 : vector<8x256xf32>
    %97 = arith.addf %88, %96 : vector<8x256xf32>
    %c0_43 = arith.constant 0 : index
    %c143 = arith.constant 143 : index
    %98 = vector.load %arg9[%c0_43, %c143] : memref<8x401xf32, #tpu.memory_space<vmem>>, vector<8x256xf32>
    %cst_44 = arith.constant 0.000000e+00 : f32
    %99 = vector.shape_cast %43 : vector<1x256xi1> to vector<1x256xi1>
    %100 = vector.broadcast %99 : vector<1x256xi1> to vector<8x256xi1>
    %101 = vector.broadcast %cst_44 : f32 to vector<8x256xf32>
    %102 = arith.select %100, %98, %101 : vector<8x256xi1>, vector<8x256xf32>
    %c0_45 = arith.constant 0 : index
    %c6 = arith.constant 6 : index
    %103 = vector.load %arg4[%c0_45, %c6] : memref<8x9xf32, #tpu.memory_space<vmem>>, vector<8x1xf32>
    %104 = vector.broadcast %103 : vector<8x1xf32> to vector<8x256xf32>
    %105 = arith.mulf %102, %104 : vector<8x256xf32>
    %106 = arith.addf %97, %105 : vector<8x256xf32>
    %c0_46 = arith.constant 0 : index
    %c144 = arith.constant 144 : index
    %107 = vector.load %arg9[%c0_46, %c144] : memref<8x401xf32, #tpu.memory_space<vmem>>, vector<8x256xf32>
    %c0_47 = arith.constant 0 : index
    %c7 = arith.constant 7 : index
    %108 = vector.load %arg4[%c0_47, %c7] : memref<8x9xf32, #tpu.memory_space<vmem>>, vector<8x1xf32>
    %109 = vector.broadcast %108 : vector<8x1xf32> to vector<8x256xf32>
    %110 = arith.mulf %107, %109 : vector<8x256xf32>
    %111 = arith.addf %106, %110 : vector<8x256xf32>
    %c0_48 = arith.constant 0 : index
    %c145 = arith.constant 145 : index
    %112 = vector.load %arg9[%c0_48, %c145] : memref<8x401xf32, #tpu.memory_space<vmem>>, vector<8x256xf32>
    %cst_49 = arith.constant 0.000000e+00 : f32
    %113 = vector.shape_cast %52 : vector<1x256xi1> to vector<1x256xi1>
    %114 = vector.broadcast %113 : vector<1x256xi1> to vector<8x256xi1>
    %115 = vector.broadcast %cst_49 : f32 to vector<8x256xf32>
    %116 = arith.select %114, %112, %115 : vector<8x256xi1>, vector<8x256xf32>
    %c0_50 = arith.constant 0 : index
    %c8 = arith.constant 8 : index
    %117 = vector.load %arg4[%c0_50, %c8] : memref<8x9xf32, #tpu.memory_space<vmem>>, vector<8x1xf32>
    %118 = vector.broadcast %117 : vector<8x1xf32> to vector<8x256xf32>
    %119 = arith.mulf %116, %118 : vector<8x256xf32>
    %120 = arith.addf %111, %119 : vector<8x256xf32>
    %c0_51 = arith.constant 0 : index
    %c2_52 = arith.constant 2 : index
    %121 = vector.load %arg3[%c0_51, %c2_52] : memref<8x4xf32, #tpu.memory_space<vmem>>, vector<8x1xf32>
    %122 = vector.broadcast %121 : vector<8x1xf32> to vector<8x256xf32>
    %123 = arith.addf %120, %122 : vector<8x256xf32>
    %cst_53 = arith.constant 0.000000e+00 : f32
    %124 = vector.broadcast %cst_53 : f32 to vector<8x256xf32>
    %125 = arith.cmpf oge, %123, %124 : vector<8x256xf32>
    %c0_54 = arith.constant 0 : index
    %c3_55 = arith.constant 3 : index
    %126 = vector.load %arg3[%c0_54, %c3_55] : memref<8x4xf32, #tpu.memory_space<vmem>>, vector<8x1xf32>
    %127 = vector.broadcast %126 : vector<8x1xf32> to vector<8x256xf32>
    %128 = arith.mulf %123, %127 : vector<8x256xf32>
    %129 = arith.select %125, %123, %128 : vector<8x256xi1>, vector<8x256xf32>
    %c0_56 = arith.constant 0 : index
    %c0_57 = arith.constant 0 : index
    %130 = vector.load %arg5[%c0_56, %c0_57] : memref<256x64xf32, #tpu.memory_space<vmem>>, vector<256x64xf32>
    %cst_58 = arith.constant dense<0.000000e+00> : vector<8x64xf32>
    %131 = tpu.matmul %129, %130, %cst_58 {dimension_numbers = #tpu.dot_dimension_numbers<[1], [0], [0], [1], [0, 0, 1, 1], [], []>} : vector<8x256xf32>, vector<256x64xf32>, vector<8x64xf32> -> vector<8x64xf32>
    %c0_59 = arith.constant 0 : index
    %c0_60 = arith.constant 0 : index
    %132 = vector.load %arg6[%c0_59, %c0_60] : memref<8x8xf32, #tpu.memory_space<vmem>>, vector<8x8xf32>
    %cst_61 = arith.constant dense<0.000000e+00> : vector<8x64xf32>
    %133 = tpu.matmul %132, %131, %cst_61 {dimension_numbers = #tpu.dot_dimension_numbers<[1], [0], [0], [1], [0, 0, 1, 1], [], []>} : vector<8x8xf32>, vector<8x64xf32>, vector<8x64xf32> -> vector<8x64xf32>
    %c0_62 = arith.constant 0 : index
    %c0_63 = arith.constant 0 : index
    %134 = vector.load %arg7[%c0_62, %c0_63] : memref<8x1xf32, #tpu.memory_space<vmem>>, vector<8x1xf32>
    %135 = vector.broadcast %134 : vector<8x1xf32> to vector<8x64xf32>
    %136 = arith.addf %133, %135 : vector<8x64xf32>
    %c0_64 = arith.constant 0 : index
    %c0_65 = arith.constant 0 : index
    %c0_66 = arith.constant 0 : index
    %137 = vector.load %arg8[%c0_64, %c0_65, %c0_66] : memref<1x8x64xf32, #tpu.memory_space<vmem>>, vector<1x8x64xf32>
    %138 = vector.shape_cast %137 : vector<1x8x64xf32> to vector<8x64xf32>
    %139 = vector.shape_cast %136 : vector<8x64xf32> to vector<1x8x64xf32>
    tpu.vector_store %arg8[%c0_64, %c0_65, %c0_66], %139 {strides = array<i32>} : memref<1x8x64xf32, #tpu.memory_space<vmem>>, vector<1x8x64xf32>,
    return
  }
  func.func @transform_0(%arg0: i32) -> (i32, i32, i32) {
    %c0_i32 = arith.constant 0 : i32
    %c0_i32_0 = arith.constant 0 : i32
    %c0_i32_1 = arith.constant 0 : i32
    return %arg0, %c0_i32, %c0_i32_0 : i32, i32, i32
  }
  func.func @transform_1(%arg0: i32) -> (i32, i32) {
    %c0_i32 = arith.constant 0 : i32
    %c0_i32_0 = arith.constant 0 : i32
    %c0_i32_1 = arith.constant 0 : i32
    return %c0_i32, %c0_i32_0 : i32, i32
  }
  func.func @transform_2(%arg0: i32) -> (i32, i32) {
    %c0_i32 = arith.constant 0 : i32
    %c0_i32_0 = arith.constant 0 : i32
    %c0_i32_1 = arith.constant 0 : i32
    return %c0_i32, %c0_i32_0 : i32, i32
  }
  func.func @transform_3(%arg0: i32) -> (i32, i32) {
    %c0_i32 = arith.constant 0 : i32
    %c0_i32_0 = arith.constant 0 : i32
    %c0_i32_1 = arith.constant 0 : i32
    return %c0_i32, %c0_i32_0 : i32, i32
  }
  func.func @transform_4(%arg0: i32) -> (i32, i32) {
    %c0_i32 = arith.constant 0 : i32
    %c0_i32_0 = arith.constant 0 : i32
    %c0_i32_1 = arith.constant 0 : i32
    return %c0_i32, %c0_i32_0 : i32, i32
  }
  func.func @transform_5(%arg0: i32) -> (i32, i32) {
    %c0_i32 = arith.constant 0 : i32
    %c0_i32_0 = arith.constant 0 : i32
    %c0_i32_1 = arith.constant 0 : i32
    return %c0_i32, %c0_i32_0 : i32, i32
  }
  func.func @transform_6(%arg0: i32) -> (i32, i32) {
    %c0_i32 = arith.constant 0 : i32
    %c0_i32_0 = arith.constant 0 : i32
    %c0_i32_1 = arith.constant 0 : i32
    return %c0_i32, %c0_i32_0 : i32, i32
  }
  func.func @transform_7(%arg0: i32) -> (i32, i32, i32) {
    %c0_i32 = arith.constant 0 : i32
    %c0_i32_0 = arith.constant 0 : i32
    %c0_i32_1 = arith.constant 0 : i32
    return %arg0, %c0_i32, %c0_i32_0 : i32, i32, i32
  }
}

</mosaic_0001>

<llo_original>
// kernel: tpu_custom_call.1
$region0: #{tpu_custom_call.1}
  #allocation0 [shape = 'u32[]', space=smem, size = 0x4, offset = 0x4, fixed_abs, tag = 'smem constant byte address 0x4 - core index']
  #allocation1 [shape = 'u32[144,128]{1,0:T(1,128)}', space=vmem, size = 0x12000, scoped, tag = 'internal scratch']
  #allocation2 [shape = 'f32[8,401]{1,0:T(8,128)}', space=vmem, size = 0x4000, scoped, tag = 'scratch operand']
  %s0 = inlined_call_operand.vmem [shape: f32[2,4,256], index: 0, kind: input, shape index: {}]
  %s1 = inlined_call_operand.vmem [shape: f32[8,4], index: 1, kind: input, shape index: {}]
  %s2 = inlined_call_operand.vmem [shape: f32[8,4], index: 2, kind: input, shape index: {}]
  %s3 = inlined_call_operand.vmem [shape: f32[8,9], index: 3, kind: input, shape index: {}]
  %s4 = inlined_call_operand.vmem [shape: f32[256,64], index: 4, kind: input, shape index: {}]
  %s5 = inlined_call_operand.vmem [shape: f32[8,8], index: 5, kind: input, shape index: {}]
  %s6 = inlined_call_operand.vmem [shape: f32[8,1], index: 6, kind: input, shape index: {}]
  %s7 = inlined_call_operand.hbm [shape: f32[2,8,64], index: 7, kind: output, shape index: {}]
  %s8 = sld [smem:[#allocation0]]
  $region61: #{tpu_custom_call.1} parent=0
    _
  %s10 = ssub.s32 1, %s8
  %s11 = scalar_select 0, %s10, %s8
  $region1: #{tpu_custom_call.1} parent=0
    #allocation3 [shape = 'u8[8192]{0}', space=vmem, size = 0x2000, scoped, tag = 'output window, operand 0']
    #allocation4 [shape = 's32[2]{0}', space=sflag, size = 0x8, scoped, tag = 'scoped memory for tpu_custom_call.1']
    %12 = vsyncpa [#allocation4], 0
    %s13 = scalar_lea.sflag [#allocation4], 1
    %14 = vsyncpa %s13, 0
    loop: start=0, step=1, limit=4
    $region2: #{tpu_custom_call.1} parent=1 // loop_pre_header
      _
    $region3: #{tpu_custom_call.1} parent=1 // loop_header
      %s16 = sphi 0, %s20
      %p17 = scmp.ge.s32.totalorder %s16, 4
      %s26 = sphi 0, %s28
      %s29 = sphi 0, %s26
      %s30 = sphi 0, %s29
      %s46 = sphi 0, %s30
      %s50 = sphi 0, %s50
      %s52 = sphi 0, %s50
      %s53 = sphi 0, %s52
      %s67 = sphi 0, %s53
      %s71 = sphi 0, %s71
      %s73 = sphi 0, %s71
      %s74 = sphi 0, %s73
      %s88 = sphi 0, %s74
      %s92 = sphi 0, %s92
      %s94 = sphi 0, %s92
      %s95 = sphi 0, %s94
      %s109 = sphi 0, %s95
      %s113 = sphi 0, %s113
      %s115 = sphi 0, %s113
      %s116 = sphi 0, %s115
      %s130 = sphi 0, %s116
      %s134 = sphi 0, %s134
      %s136 = sphi 0, %s134
      %s137 = sphi 0, %s136
      %s151 = sphi 0, %s137
      %s155 = sphi 0, %s155
      %s157 = sphi 0, %s155
      %s158 = sphi 0, %s157
      %s172 = sphi 0, %s158
      %s178 = sphi 0, %s180
      %s181 = sphi 0, %s178
      %s182 = sphi 0, %s181
      %s198 = sphi 0, %s182
    $region4: #{tpu_custom_call.1} parent=1 // loop_header_branch
      %19 = sbr.rel (%p17) target = $region8
    $region5: #{tpu_custom_call.1} parent=1 // loop_body
      %s21 = ssub.s32 %s16, 1
      %s22 = ssub.s32 %s16, 2
      %s23 = sadd.s32 %s16, 1
      %s24 = ssub.s32 %s16, %s23
      %p25 = scmp.eq.s32.totalorder %s24, 0
      %s27 = sadd.s32 %s26, 1
      %s28 = scalar_select %p25, %s26, %s27
      %p31 = pneg %p25
      %p32 = scmp.eq.s32.totalorder %s16, 1
      %p33 = por %p31, %p32
      %p34 = scmp.ne.s32.totalorder %s26, %s29
      %p35 = scmp.eq.s32.totalorder %s16, 0
      %p36 = por %p34, %p35
      %p37 = scmp.ne.s32.totalorder %s26, %s29
      %p38 = scmp.eq.s32.totalorder %s21, 1
      %p39 = por %p37, %p38
      %p40 = scmp.ne.s32.totalorder %s29, %s30
      %p41 = scmp.eq.s32.totalorder %s21, 0
      %p42 = por %p40, %p41
      %p43 = scmp.ne.s32.totalorder %s29, %s30
      %p44 = scmp.eq.s32.totalorder %s22, 1
      %p45 = por %p43, %p44
      %p47 = scmp.ne.s32.totalorder %s30, %s46
      %p48 = scmp.eq.s32.totalorder %s22, 0
      %p49 = por %p47, %p48
      %s51 = sadd.s32 %s50, 1
      %p54 = scmp.eq.s32.totalorder %s16, 1
      %p55 = scmp.ne.s32.totalorder %s50, %s52
      %p56 = scmp.eq.s32.totalorder %s16, 0
      %p57 = por %p55, %p56
      %p58 = scmp.ne.s32.totalorder %s50, %s52
      %p59 = scmp.eq.s32.totalorder %s21, 1
      %p60 = por %p58, %p59
      %p61 = scmp.ne.s32.totalorder %s52, %s53
      %p62 = scmp.eq.s32.totalorder %s21, 0
      %p63 = por %p61, %p62
      %p64 = scmp.ne.s32.totalorder %s52, %s53
      %p65 = scmp.eq.s32.totalorder %s22, 1
      %p66 = por %p64, %p65
      %p68 = scmp.ne.s32.totalorder %s53, %s67
      %p69 = scmp.eq.s32.totalorder %s22, 0
      %p70 = por %p68, %p69
      %s72 = sadd.s32 %s71, 1
      %p75 = scmp.eq.s32.totalorder %s16, 1
      %p76 = scmp.ne.s32.totalorder %s71, %s73
      %p77 = scmp.eq.s32.totalorder %s16, 0
      %p78 = por %p76, %p77
      %p79 = scmp.ne.s32.totalorder %s71, %s73
      %p80 = scmp.eq.s32.totalorder %s21, 1
      %p81 = por %p79, %p80
      %p82 = scmp.ne.s32.totalorder %s73, %s74
      %p83 = scmp.eq.s32.totalorder %s21, 0
      %p84 = por %p82, %p83
      %p85 = scmp.ne.s32.totalorder %s73, %s74
      %p86 = scmp.eq.s32.totalorder %s22, 1
      %p87 = por %p85, %p86
      %p89 = scmp.ne.s32.totalorder %s74, %s88
      %p90 = scmp.eq.s32.totalorder %s22, 0
      %p91 = por %p89, %p90
      %s93 = sadd.s32 %s92, 1
      %p96 = scmp.eq.s32.totalorder %s16, 1
      %p97 = scmp.ne.s32.totalorder %s92, %s94
      %p98 = scmp.eq.s32.totalorder %s16, 0
      %p99 = por %p97, %p98
      %p100 = scmp.ne.s32.totalorder %s92, %s94
      %p101 = scmp.eq.s32.totalorder %s21, 1
      %p102 = por %p100, %p101
      %p103 = scmp.ne.s32.totalorder %s94, %s95
      %p104 = scmp.eq.s32.totalorder %s21, 0
      %p105 = por %p103, %p104
      %p106 = scmp.ne.s32.totalorder %s94, %s95
      %p107 = scmp.eq.s32.totalorder %s22, 1
      %p108 = por %p106, %p107
      %p110 = scmp.ne.s32.totalorder %s95, %s109
      %p111 = scmp.eq.s32.totalorder %s22, 0
      %p112 = por %p110, %p111
      %s114 = sadd.s32 %s113, 1
      %p117 = scmp.eq.s32.totalorder %s16, 1
      %p118 = scmp.ne.s32.totalorder %s113, %s115
      %p119 = scmp.eq.s32.totalorder %s16, 0
      %p120 = por %p118, %p119
      %p121 = scmp.ne.s32.totalorder %s113, %s115
      %p122 = scmp.eq.s32.totalorder %s21, 1
      %p123 = por %p121, %p122
      %p124 = scmp.ne.s32.totalorder %s115, %s116
      %p125 = scmp.eq.s32.totalorder %s21, 0
      %p126 = por %p124, %p125
      %p127 = scmp.ne.s32.totalorder %s115, %s116
      %p128 = scmp.eq.s32.totalorder %s22, 1
      %p129 = por %p127, %p128
      %p131 = scmp.ne.s32.totalorder %s116, %s130
      %p132 = scmp.eq.s32.totalorder %s22, 0
      %p133 = por %p131, %p132
      %s135 = sadd.s32 %s134, 1
      %p138 = scmp.eq.s32.totalorder %s16, 1
      %p139 = scmp.ne.s32.totalorder %s134, %s136
      %p140 = scmp.eq.s32.totalorder %s16, 0
      %p141 = por %p139, %p140
      %p142 = scmp.ne.s32.totalorder %s134, %s136
      %p143 = scmp.eq.s32.totalorder %s21, 1
      %p144 = por %p142, %p143
      %p145 = scmp.ne.s32.totalorder %s136, %s137
      %p146 = scmp.eq.s32.totalorder %s21, 0
      %p147 = por %p145, %p146
      %p148 = scmp.ne.s32.totalorder %s136, %s137
      %p149 = scmp.eq.s32.totalorder %s22, 1
      %p150 = por %p148, %p149
      %p152 = scmp.ne.s32.totalorder %s137, %s151
      %p153 = scmp.eq.s32.totalorder %s22, 0
      %p154 = por %p152, %p153
      %s156 = sadd.s32 %s155, 1
      %p159 = scmp.eq.s32.totalorder %s16, 1
      %p160 = scmp.ne.s32.totalorder %s155, %s157
      %p161 = scmp.eq.s32.totalorder %s16, 0
      %p162 = por %p160, %p161
      %p163 = scmp.ne.s32.totalorder %s155, %s157
      %p164 = scmp.eq.s32.totalorder %s21, 1
      %p165 = por %p163, %p164
      %p166 = scmp.ne.s32.totalorder %s157, %s158
      %p167 = scmp.eq.s32.totalorder %s21, 0
      %p168 = por %p166, %p167
      %p169 = scmp.ne.s32.totalorder %s157, %s158
      %p170 = scmp.eq.s32.totalorder %s22, 1
      %p171 = por %p169, %p170
      %p173 = scmp.ne.s32.totalorder %s158, %s172
      %p174 = scmp.eq.s32.totalorder %s22, 0
      %p175 = por %p173, %p174
      %s176 = ssub.s32 %s16, %s23
      %p177 = scmp.eq.s32.totalorder %s176, 0
      %s179 = sadd.s32 %s178, 1
      %s180 = scalar_select %p177, %s178, %s179
      %p183 = pneg %p177
      %p184 = scmp.eq.s32.totalorder %s16, 1
      %p185 = por %p183, %p184
      %p186 = scmp.ne.s32.totalorder %s178, %s181
      %p187 = scmp.eq.s32.totalorder %s16, 0
      %p188 = por %p186, %p187
      %p189 = scmp.ne.s32.totalorder %s178, %s181
      %p190 = scmp.eq.s32.totalorder %s21, 1
      %p191 = por %p189, %p190
      %p192 = scmp.ne.s32.totalorder %s181, %s182
      %p193 = scmp.eq.s32.totalorder %s21, 0
      %p194 = por %p192, %p193
      %p195 = scmp.ne.s32.totalorder %s181, %s182
      %p196 = scmp.eq.s32.totalorder %s22, 1
      %p197 = por %p195, %p196
      %p199 = scmp.ne.s32.totalorder %s182, %s198
      %p200 = scmp.eq.s32.totalorder %s22, 0
      %p201 = por %p199, %p200
      %p202 = scmp.le.s32.totalorder 1, %s16
      %p203 = scmp.lt.s32.totalorder %s16, 3
      %p204 = pnand %p202, %p203
      %p205 = pneg %p204
      // Predicated region
      $region9: #{tpu_custom_call.1} parent=5 // pred_check
        _
      $region10: #{tpu_custom_call.1} parent=5 // pred_check_branch
        %207 = sbr.rel (%p204) target = $region12
      $region11: #{tpu_custom_call.1} parent=5 // pred_region
        %s208 = ssub.s32 %s16, 1
        // Predicated region
        $region13: #{tpu_custom_call.1} parent=11 // pred_check
          %p209 = pneg %p63
        $region14: #{tpu_custom_call.1} parent=11 // pred_check_branch
          %211 = sbr.rel (%p209) target = $region16
        $region15: #{tpu_custom_call.1} parent=11 // pred_region
          _
        $region16: #{tpu_custom_call.1} parent=11 // pred_fallthru
          _
        // Predicated region
        $region17: #{tpu_custom_call.1} parent=11 // pred_check
          %p212 = pneg %p84
        $region18: #{tpu_custom_call.1} parent=11 // pred_check_branch
          %214 = sbr.rel (%p212) target = $region20
        $region19: #{tpu_custom_call.1} parent=11 // pred_region
          _
        $region20: #{tpu_custom_call.1} parent=11 // pred_fallthru
          _
        // Predicated region
        $region21: #{tpu_custom_call.1} parent=11 // pred_check
          %p215 = pneg %p105
        $region22: #{tpu_custom_call.1} parent=11 // pred_check_branch
          %217 = sbr.rel (%p215) target = $region24
        $region23: #{tpu_custom_call.1} parent=11 // pred_region
          _
        $region24: #{tpu_custom_call.1} parent=11 // pred_fallthru
          _
        // Predicated region
        $region25: #{tpu_custom_call.1} parent=11 // pred_check
          %p218 = pneg %p126
        $region26: #{tpu_custom_call.1} parent=11 // pred_check_branch
          %220 = sbr.rel (%p218) target = $region28
        $region27: #{tpu_custom_call.1} parent=11 // pred_region
          _
        $region28: #{tpu_custom_call.1} parent=11 // pred_fallthru
          _
        // Predicated region
        $region29: #{tpu_custom_call.1} parent=11 // pred_check
          %p221 = pneg %p147
        $region30: #{tpu_custom_call.1} parent=11 // pred_check_branch
          %223 = sbr.rel (%p221) target = $region32
        $region31: #{tpu_custom_call.1} parent=11 // pred_region
          _
        $region32: #{tpu_custom_call.1} parent=11 // pred_fallthru
          _
        // Predicated region
        $region33: #{tpu_custom_call.1} parent=11 // pred_check
          %p224 = pneg %p168
        $region34: #{tpu_custom_call.1} parent=11 // pred_check_branch
          %226 = sbr.rel (%p224) target = $region36
        $region35: #{tpu_custom_call.1} parent=11 // pred_region
          _
        $region36: #{tpu_custom_call.1} parent=11 // pred_fallthru
          _
      $region12: #{tpu_custom_call.1} parent=5 // pred_fallthru
        _
      %p227 = scmp.lt.s32.totalorder %s16, 2
      // Predicated region
      $region37: #{tpu_custom_call.1} parent=5 // pred_check
        %p228 = pneg %p227
      $region38: #{tpu_custom_call.1} parent=5 // pred_check_branch
        %230 = sbr.rel (%p228) target = $region40
      $region39: #{tpu_custom_call.1} parent=5 // pred_region
        // Predicated region
        $region41: #{tpu_custom_call.1} parent=39 // pred_check
          %p231 = pneg %p36
        $region42: #{tpu_custom_call.1} parent=39 // pred_check_branch
          %233 = sbr.rel (%p231) target = $region44
        $region43: #{tpu_custom_call.1} parent=39 // pred_region
          %p234 = scmp.lt.s32.totalorder %s16, 1
          %s235 = scalar_select %p234, %s16, 1
          %s236 = smul.addr %s235, 2
          %s237 = smul.addr %s236, 4
          %s238 = scalar_lea.vmem %s0, %s237
        $region44: #{tpu_custom_call.1} parent=39 // pred_fallthru
          _
      $region40: #{tpu_custom_call.1} parent=5 // pred_fallthru
        _
      %p239 = scmp.le.s32.totalorder 1, %s16
      %p240 = scmp.lt.s32.totalorder %s16, 3
      %p241 = pnand %p239, %p240
      %p242 = pneg %p241
      // Predicated region
      $region45: #{tpu_custom_call.1} parent=5 // pred_check
        _
      $region46: #{tpu_custom_call.1} parent=5 // pred_check_branch
        %244 = sbr.rel (%p241) target = $region48
      $region47: #{tpu_custom_call.1} parent=5 // pred_region
        %s245 = ssub.s32 %s16, 1
        %p246 = scmp.lt.s32.totalorder %s21, 1
        %s247 = scalar_select %p246, %s21, 1
        %s248 = smul.addr %s247, 2
        %s249 = smul.addr %s248, 4
        %s250 = scalar_lea.vmem %s0, %s249
        %p251 = pneg %p42
        %p252 = pneg %p39
        %p253 = pneg %p63
        %p254 = pneg %p60
        %p255 = pneg %p84
        %p256 = pneg %p81
        %p257 = pneg %p105
        %p258 = pneg %p102
        %p259 = pneg %p126
        %p260 = pneg %p123
        %p261 = pneg %p147
        %p262 = pneg %p144
        %p263 = pneg %p168
        %p264 = pneg %p165
        %p265 = pneg %p194
        %p266 = pneg %p191
        %s267 = sand.u32 %s181, 1
        %s268 = scalar_lea.sflag [#allocation4], %s267
        %s269 = sand.u32 %s181, 1
        %s270 = smul.addr %s269, 8
        %s271 = scalar_lea.vmem [#allocation3], %s270
        %p272 = scmp.lt.s32.totalorder %s21, 1
        %s273 = scalar_select %p272, %s21, 1
        %s274 = smul.addr %s273, 2
        %s275 = smul.addr %s274, 4
        %s276 = scalar_lea.vmem %s0, %s275
        %v277 = vld [vmem:[%s1] sm:$0xff]
        %v278 = vld [vmem:[%s276] sm:$0xff]
        %v279 = vld [vmem:[%s2] sm:$0xff]
        %281 = vset.pattern.permute.xlu0 0
        %282 = vperm.xlu0 %281, %v279
        %v283 = vpop.permute.xlu0 %282
        %v286 = vcombine.high %v278, %v278
        %vm287 = vcmask 31744
        %v289 = vsel %vm287, %v277, 0
        %vm291 = vcmask 1043456
        %v292 = vsel %vm291, %v278, 0
        %v294 = vsel %vm291, %v286, 0
        %296 = vmatprep.subr.mxu0 0.0
        %297 = vmatpush1.msra.mxu0 0.0
        %298 = vmatprep.subr.mxu0 0.0
        %299 = vmatpush1.msra.mxu0 0.0
        %300 = vmatprep.subr.mxu0 0.0
        %301 = vmatpush1.msra.mxu0 0.0
        %302 = vmatprep.subr.mxu0 0.0
        %303 = vmatpush1.msra.mxu0 0.0
        %304 = vmatprep.subr.mxu0 0.0
        %305 = vmatpush1.msra.mxu0 0.0
        %306 = vmatprep.subr.mxu0 0.0
        %307 = vmatpush1.msra.mxu0 0.0
        %308 = vmatprep.subr.mxu0 0.0
        %309 = vmatpush1.msra.mxu0 0.0
        %310 = vmatprep.subr.mxu0 0.0
        %311 = vmatpush1.msra.mxu0 0.0
        %312 = vmatprep.subr.mxu0 0.0
        %313 = vmatpush1.msra.mxu0 0.0
        %314 = vmatprep.subr.mxu0 0.0
        %315 = vmatpush1.msra.mxu0 0.0
        %316 = vmatprep.subr.mxu0 0.0
        %317 = vmatpush1.msra.mxu0 0.0
        %318 = vmatprep.subr.mxu0 0.0
        %319 = vmatpush1.msra.mxu0 0.0
        %320 = vmatprep.subr.mxu0 0.0
        %321 = vmatpush1.msra.mxu0 0.0
        %322 = vmatprep.subr.mxu0 0.0
        %323 = vmatpush1.msra.mxu0 0.0
        %324 = vmatprep.subr.mxu0 0.0
        %325 = vmatpush1.msra.mxu0 0.0
        %326 = vmatprep.subr.mxu0 %v294
        %327 = vmatpush1.msra.mxu0 %v292
        %328 = vmatprep.subr.mxu0 0.0
        %329 = vmatpush2.msra.mxu0 0.0
        %330 = vmatprep.subr.mxu0 0.0
        %331 = vmatpush2.msra.mxu0 0.0
        %332 = vmatprep.subr.mxu0 0.0
        %333 = vmatpush2.msra.mxu0 0.0
        %334 = vmatprep.subr.mxu0 0.0
        %335 = vmatpush2.msra.mxu0 0.0
        %336 = vmatprep.subr.mxu0 0.0
        %337 = vmatpush2.msra.mxu0 0.0
        %338 = vmatprep.subr.mxu0 0.0
        %339 = vmatpush2.msra.mxu0 0.0
        %340 = vmatprep.subr.mxu0 0.0
        %341 = vmatpush2.msra.mxu0 0.0
        %342 = vmatprep.subr.mxu0 0.0
        %343 = vmatpush2.msra.mxu0 0.0
        %344 = vmatprep.subr.mxu0 0.0
        %345 = vmatpush2.msra.mxu0 0.0
        %346 = vmatprep.subr.mxu0 0.0
        %347 = vmatpush2.msra.mxu0 0.0
        %348 = vmatprep.subr.mxu0 0.0
        %349 = vmatpush2.msra.mxu0 0.0
        %350 = vmatprep.subr.mxu0 0.0
        %351 = vmatpush2.msra.mxu0 0.0
        %352 = vmatprep.subr.mxu0 0.0
        %353 = vmatpush2.msra.mxu0 0.0
        %354 = vmatprep.subr.mxu0 0.0
        %355 = vmatpush2.msra.mxu0 0.0
        %356 = vmatprep.subr.mxu0 0.0
        %357 = vmatpush2.msra.mxu0 0.0
        %358 = vmatprep.subr.mxu0 0.0
        %359 = vmatpush2.msra.mxu0 0.0
        %360 = vmatprep.mubr.f32.mxu0 0.0
        %361 = vmatmul.mubr.f32.gmra.mxu0 %v289
        %v362 = vpop.f32.mrf.mxu0
        %v363 = vadd.f32 %v283, %v362
        %v364 = vpop.f32.mrf.mxu0
        %v365 = vadd.f32 %v283, %v364
        %366 = vdwg.mxu0
        %vm367 = vcmp.ge.f32.partialorder %v363, 0.0
        %vm368 = vcmp.ge.f32.partialorder %v365, 0.0
        %v369 = vld [vmem:[%s2] sm:$0xff]
        %371 = vset.pattern.permute.xlu0 1
        %372 = vperm.xlu0 %371, %v369
        %v373 = vpop.permute.xlu0 %372
        %v375 = vmul.f32 %v363, %v373
        %v376 = vmul.f32 %v365, %v373
        %v377 = vsel %vm367, %v363, %v375
        %v378 = vsel %vm368, %v365, %v376
        %vm379 = vcmask 1048440
        %380 = vst.msk [vmem:[#allocation2] sm:$0xff] %vm379, 0.0
        %vm381 = vcmask 138240
        %382 = vst.msk [vmem:[#allocation2 + $0x18] sm:$0xff] %vm381, 0.0
        %383 = vst [vmem:[#allocation2 + $0x8] sm:$0xff] %v377
        %384 = vst [vmem:[#allocation2 + $0x10] sm:$0xff] %v378
        %v385 = vlaneseq
        %v386 = vand.u32 %v385, 127
        %v387 = vadd.s32 %v386, 128
        %vm388 = vcmp.lt.s32.totalorder %v386, 0
        %v389 = vsub.s32 0, %v386
        %v390 = vsel %vm388, %v389, %v386
        %v391 = vshrl.u32 %v390, 4
        %v392 = vand.u32 %v390, 15
        %v393 = vsub.s32 0, %v392
        %v394 = vsel %vm388, %v393, %v392
        %vm395 = vcmp.lt.s32.totalorder %v387, 0
        %v396 = vsub.s32 0, %v387
        %v397 = vsel %vm395, %v396, %v387
        %v398 = vshrl.u32 %v397, 4
        %v399 = vand.u32 %v397, 15
        %v400 = vsub.s32 0, %v399
        %v401 = vsel %vm395, %v400, %v399
        %vm402 = vcmp.ne.s32.totalorder %v394, 0
        %vm403 = vcmp.ne.s32.totalorder %v401, 0
        %vm404 = vcmp.lt.s32.totalorder %v394, 0
        %vm405 = vcmp.lt.s32.totalorder %v401, 0
        %vm406 = vmand %vm404, %vm402
        %vm407 = vmand %vm405, %vm403
        %v408 = vadd.s32 %v394, 16
        %v409 = vadd.s32 %v401, 16
        %v410 = vsel %vm406, %v408, %v394
        %v411 = vsel %vm407, %v409, %v401
        %v412 = vadd.s32 %v410, 4294967295
        %v413 = vadd.s32 %v411, 4294967295
        %vm414 = vcmp.ge.s32.totalorder %v412, 0
        %vm415 = vcmp.ge.s32.totalorder %v413, 0
        %vm416 = vcmp.lt.s32.totalorder %v412, 16
        %vm417 = vcmp.lt.s32.totalorder %v413, 16
        %vm418 = vmand %vm414, %vm416
        %vm419 = vmand %vm415, %vm417
        %v420 = vadd.s32 %v410, 1
        %v421 = vadd.s32 %v411, 1
        %vm422 = vcmp.ge.s32.totalorder %v420, 0
        %vm423 = vcmp.ge.s32.totalorder %v421, 0
        %vm424 = vcmp.lt.s32.totalorder %v420, 16
        %vm425 = vcmp.lt.s32.totalorder %v421, 16
        %vm426 = vmand %vm422, %vm424
        %vm427 = vmand %vm423, %vm425
        %v428 = vld [vmem:[#allocation2] sm:$0xff]
        %v429 = vld [vmem:[#allocation2 + $0x8] sm:$0xff]
        %v430 = vld [vmem:[#allocation2 + $0x10] sm:$0xff]
        %v431 = vsel %vm418, 1, 0
        %v432 = vsel %vm419, 1, 0
        %vm433 = vcmp.eq.s32.totalorder %v431, 1
        %vm434 = vcmp.eq.s32.totalorder %v432, 1
        %438 = vrot.lane.b32.xlu0 %v428, 17
        %v439 = vpop.permute.xlu0 %438
        %440 = vrot.lane.b32.xlu0 %v429, 17
        %v441 = vpop.permute.xlu0 %440
        %442 = vrot.lane.b32.xlu0 %v430, 17
        %v443 = vpop.permute.xlu0 %442
        %v444 = vsel %vm381, %v439, %v441
        %v445 = vsel %vm381, %v441, %v443
        %v448 = vsel %vm433, %v444, 0.0
        %v449 = vsel %vm434, %v445, 0.0
        %v450 = vld [vmem:[%s3] sm:$0xff]
        %452 = vset.pattern.permute.xlu0 0
        %453 = vperm.xlu0 %452, %v450
        %v454 = vpop.permute.xlu0 %453
        %v456 = vmul.f32 %v448, %v454
        %v457 = vmul.f32 %v449, %v454
        %458 = vset.pattern.permute.xlu0 1
        %459 = vperm.xlu0 %458, %v450
        %v460 = vpop.permute.xlu0 %459
        %v462 = vmul.f32 %v428, %v460
        %v463 = vmul.f32 %v429, %v460
        %v464 = vmul.f32 %v430, %v460
        %468 = vrot.lane.b32.xlu0 %v462, 16
        %v469 = vpop.permute.xlu0 %468
        %470 = vrot.lane.b32.xlu0 %v463, 16
        %v471 = vpop.permute.xlu0 %470
        %472 = vrot.lane.b32.xlu0 %v464, 16
        %v473 = vpop.permute.xlu0 %472
        %vm474 = vcmask 130048
        %v475 = vsel %vm474, %v469, %v471
        %v476 = vsel %vm474, %v471, %v473
        %v479 = vadd.f32 %v456, %v475
        %v480 = vadd.f32 %v457, %v476
        %v481 = vsel %vm426, 1, 0
        %v482 = vsel %vm427, 1, 0
        %vm483 = vcmp.eq.s32.totalorder %v481, 1
        %vm484 = vcmp.eq.s32.totalorder %v482, 1
        %485 = vrot.lane.b32.xlu0 %v428, 15
        %v486 = vpop.permute.xlu0 %485
        %487 = vrot.lane.b32.xlu0 %v429, 15
        %v488 = vpop.permute.xlu0 %487
        %489 = vrot.lane.b32.xlu0 %v430, 15
        %v490 = vpop.permute.xlu0 %489
        %vm491 = vcmask 121856
        %v492 = vsel %vm491, %v486, %v488
        %v493 = vsel %vm491, %v488, %v490
        %v496 = vsel %vm483, %v492, 0.0
        %v497 = vsel %vm484, %v493, 0.0
        %498 = vset.pattern.permute.xlu0 2
        %499 = vperm.xlu0 %498, %v450
        %v500 = vpop.permute.xlu0 %499
        %v502 = vmul.f32 %v496, %v500
        %v503 = vmul.f32 %v497, %v500
        %v504 = vadd.f32 %v479, %v502
        %v505 = vadd.f32 %v480, %v503
        %506 = vrot.lane.b32.xlu0 %v428, 1
        %v507 = vpop.permute.xlu0 %506
        %508 = vrot.lane.b32.xlu0 %v429, 1
        %v509 = vpop.permute.xlu0 %508
        %510 = vrot.lane.b32.xlu0 %v430, 1
        %v511 = vpop.permute.xlu0 %510
        %vm512 = vcmask 7168
        %v513 = vsel %vm512, %v507, %v509
        %v514 = vsel %vm512, %v509, %v511
        %v517 = vsel %vm433, %v513, 0.0
        %v518 = vsel %vm434, %v514, 0.0
        %519 = vset.pattern.permute.xlu0 3
        %520 = vperm.xlu0 %519, %v450
        %v521 = vpop.permute.xlu0 %520
        %v523 = vmul.f32 %v517, %v521
        %v524 = vmul.f32 %v518, %v521
        %v525 = vadd.f32 %v504, %v523
        %v526 = vadd.f32 %v505, %v524
        %527 = vset.pattern.permute.xlu0 4
        %528 = vperm.xlu0 %527, %v450
        %v529 = vpop.permute.xlu0 %528
        %v531 = vmul.f32 %v429, %v529
        %v532 = vmul.f32 %v430, %v529
        %v533 = vadd.f32 %v525, %v531
        %v534 = vadd.f32 %v526, %v532
        %v535 = vld [vmem:[#allocation2 + $0x8] sm:$0xff]
        %v536 = vld [vmem:[#allocation2 + $0x10] sm:$0xff]
        %v537 = vld [vmem:[#allocation2 + $0x18] sm:$0xff]
        %541 = vrot.lane.b32.xlu0 %v535, 127
        %v542 = vpop.permute.xlu0 %541
        %543 = vrot.lane.b32.xlu0 %v536, 127
        %v544 = vpop.permute.xlu0 %543
        %545 = vrot.lane.b32.xlu0 %v537, 127
        %v546 = vpop.permute.xlu0 %545
        %vm547 = vcmask 1039360
        %v548 = vsel %vm547, %v542, %v544
        %v549 = vsel %vm547, %v544, %v546
        %v552 = vsel %vm483, %v548, 0.0
        %v553 = vsel %vm484, %v549, 0.0
        %554 = vset.pattern.permute.xlu0 5
        %555 = vperm.xlu0 %554, %v450
        %v556 = vpop.permute.xlu0 %555
        %v558 = vmul.f32 %v552, %v556
        %v559 = vmul.f32 %v553, %v556
        %v560 = vadd.f32 %v533, %v558
        %v561 = vadd.f32 %v534, %v559
        %562 = vrot.lane.b32.xlu0 %v535, 113
        %v563 = vpop.permute.xlu0 %562
        %564 = vrot.lane.b32.xlu0 %v536, 113
        %v565 = vpop.permute.xlu0 %564
        %566 = vrot.lane.b32.xlu0 %v537, 113
        %v567 = vpop.permute.xlu0 %566
        %vm568 = vcmask 924672
        %v569 = vsel %vm568, %v563, %v565
        %v570 = vsel %vm568, %v565, %v567
        %v573 = vsel %vm433, %v569, 0.0
        %v574 = vsel %vm434, %v570, 0.0
        %575 = vset.pattern.permute.xlu0 6
        %576 = vperm.xlu0 %575, %v450
        %v577 = vpop.permute.xlu0 %576
        %v579 = vmul.f32 %v573, %v577
        %v580 = vmul.f32 %v574, %v577
        %v581 = vadd.f32 %v560, %v579
        %v582 = vadd.f32 %v561, %v580
        %583 = vset.pattern.permute.xlu0 7
        %584 = vperm.xlu0 %583, %v450
        %v585 = vpop.permute.xlu0 %584
        %v587 = vmul.f32 %v535, %v585
        %v588 = vmul.f32 %v536, %v585
        %v589 = vmul.f32 %v537, %v585
        %593 = vrot.lane.b32.xlu0 %v587, 112
        %v594 = vpop.permute.xlu0 %593
        %595 = vrot.lane.b32.xlu0 %v588, 112
        %v596 = vpop.permute.xlu0 %595
        %597 = vrot.lane.b32.xlu0 %v589, 112
        %v598 = vpop.permute.xlu0 %597
        %vm599 = vcmask 916480
        %v600 = vsel %vm599, %v594, %v596
        %v601 = vsel %vm599, %v596, %v598
        %v604 = vadd.f32 %v581, %v600
        %v605 = vadd.f32 %v582, %v601
        %606 = vrot.lane.b32.xlu0 %v535, 111
        %v607 = vpop.permute.xlu0 %606
        %608 = vrot.lane.b32.xlu0 %v536, 111
        %v609 = vpop.permute.xlu0 %608
        %610 = vrot.lane.b32.xlu0 %v537, 111
        %v611 = vpop.permute.xlu0 %610
        %vm612 = vcmask 908288
        %v613 = vsel %vm612, %v607, %v609
        %v614 = vsel %vm612, %v609, %v611
        %v617 = vsel %vm483, %v613, 0.0
        %v618 = vsel %vm484, %v614, 0.0
        %619 = vset.pattern.permute.xlu0 8
        %620 = vperm.xlu0 %619, %v450
        %v621 = vpop.permute.xlu0 %620
        %v623 = vmul.f32 %v617, %v621
        %v624 = vmul.f32 %v618, %v621
        %v625 = vadd.f32 %v604, %v623
        %v626 = vadd.f32 %v605, %v624
        %v627 = vld [vmem:[%s2] sm:$0xff]
        %629 = vset.pattern.permute.xlu0 2
        %630 = vperm.xlu0 %629, %v627
        %v631 = vpop.permute.xlu0 %630
        %v633 = vadd.f32 %v625, %v631
        %v634 = vadd.f32 %v626, %v631
        %vm635 = vcmp.ge.f32.partialorder %v633, 0.0
        %vm636 = vcmp.ge.f32.partialorder %v634, 0.0
        %637 = vset.pattern.permute.xlu0 3
        %638 = vperm.xlu0 %637, %v627
        %v639 = vpop.permute.xlu0 %638
        %v641 = vmul.f32 %v633, %v639
        %v642 = vmul.f32 %v634, %v639
        %v643 = vsel %vm635, %v633, %v641
        %v644 = vsel %vm636, %v634, %v642
        %v645 = vld [vmem:[%s4] sm:$0xff]
        %v646 = vld [vmem:[%s4 + $0x8] sm:$0xff]
        %v647 = vld [vmem:[%s4 + $0x10] sm:$0xff]
        %v648 = vld [vmem:[%s4 + $0x18] sm:$0xff]
        %v649 = vld [vmem:[%s4 + $0x20] sm:$0xff]
        %v650 = vld [vmem:[%s4 + $0x28] sm:$0xff]
        %v651 = vld [vmem:[%s4 + $0x30] sm:$0xff]
        %v652 = vld [vmem:[%s4 + $0x38] sm:$0xff]
        %v653 = vld [vmem:[%s4 + $0x40] sm:$0xff]
        %v654 = vld [vmem:[%s4 + $0x48] sm:$0xff]
        %v655 = vld [vmem:[%s4 + $0x50] sm:$0xff]
        %v656 = vld [vmem:[%s4 + $0x58] sm:$0xff]
        %v657 = vld [vmem:[%s4 + $0x60] sm:$0xff]
        %v658 = vld [vmem:[%s4 + $0x68] sm:$0xff]
        %v659 = vld [vmem:[%s4 + $0x70] sm:$0xff]
        %v660 = vld [vmem:[%s4 + $0x78] sm:$0xff]
        %v661 = vld [vmem:[%s4 + $0x80] sm:$0xff]
        %v662 = vld [vmem:[%s4 + $0x88] sm:$0xff]
        %v663 = vld [vmem:[%s4 + $0x90] sm:$0xff]
        %v664 = vld [vmem:[%s4 + $0x98] sm:$0xff]
        %v665 = vld [vmem:[%s4 + $0xa0] sm:$0xff]
        %v666 = vld [vmem:[%s4 + $0xa8] sm:$0xff]
        %v667 = vld [vmem:[%s4 + $0xb0] sm:$0xff]
        %v668 = vld [vmem:[%s4 + $0xb8] sm:$0xff]
        %v669 = vld [vmem:[%s4 + $0xc0] sm:$0xff]
        %v670 = vld [vmem:[%s4 + $0xc8] sm:$0xff]
        %v671 = vld [vmem:[%s4 + $0xd0] sm:$0xff]
        %v672 = vld [vmem:[%s4 + $0xd8] sm:$0xff]
        %v673 = vld [vmem:[%s4 + $0xe0] sm:$0xff]
        %v674 = vld [vmem:[%s4 + $0xe8] sm:$0xff]
        %v675 = vld [vmem:[%s4 + $0xf0] sm:$0xff]
        %v676 = vld [vmem:[%s4 + $0xf8] sm:$0xff]
        %677 = vmatprep.subr.mxu0 0.0
        %678 = vmatpush1.msra.mxu0 %v660
        %679 = vmatprep.subr.mxu0 0.0
        %680 = vmatpush1.msra.mxu0 %v659
        %681 = vmatprep.subr.mxu0 0.0
        %682 = vmatpush1.msra.mxu0 %v658
        %683 = vmatprep.subr.mxu0 0.0
        %684 = vmatpush1.msra.mxu0 %v657
        %685 = vmatprep.subr.mxu0 0.0
        %686 = vmatpush1.msra.mxu0 %v656
        %687 = vmatprep.subr.mxu0 0.0
        %688 = vmatpush1.msra.mxu0 %v655
        %689 = vmatprep.subr.mxu0 0.0
        %690 = vmatpush1.msra.mxu0 %v654
        %691 = vmatprep.subr.mxu0 0.0
        %692 = vmatpush1.msra.mxu0 %v653
        %693 = vmatprep.subr.mxu0 0.0
        %694 = vmatpush1.msra.mxu0 %v652
        %695 = vmatprep.subr.mxu0 0.0
        %696 = vmatpush1.msra.mxu0 %v651
        %697 = vmatprep.subr.mxu0 0.0
        %698 = vmatpush1.msra.mxu0 %v650
        %699 = vmatprep.subr.mxu0 0.0
        %700 = vmatpush1.msra.mxu0 %v649
        %701 = vmatprep.subr.mxu0 0.0
        %702 = vmatpush1.msra.mxu0 %v648
        %703 = vmatprep.subr.mxu0 0.0
        %704 = vmatpush1.msra.mxu0 %v647
        %705 = vmatprep.subr.mxu0 0.0
        %706 = vmatpush1.msra.mxu0 %v646
        %707 = vmatprep.subr.mxu0 0.0
        %708 = vmatpush1.msra.mxu0 %v645
        %709 = vmatprep.subr.mxu0 0.0
        %710 = vmatpush2.msra.mxu0 %v676
        %711 = vmatprep.subr.mxu0 0.0
        %712 = vmatpush2.msra.mxu0 %v675
        %713 = vmatprep.subr.mxu0 0.0
        %714 = vmatpush2.msra.mxu0 %v674
        %715 = vmatprep.subr.mxu0 0.0
        %716 = vmatpush2.msra.mxu0 %v673
        %717 = vmatprep.subr.mxu0 0.0
        %718 = vmatpush2.msra.mxu0 %v672
        %719 = vmatprep.subr.mxu0 0.0
        %720 = vmatpush2.msra.mxu0 %v671
        %721 = vmatprep.subr.mxu0 0.0
        %722 = vmatpush2.msra.mxu0 %v670
        %723 = vmatprep.subr.mxu0 0.0
        %724 = vmatpush2.msra.mxu0 %v669
        %725 = vmatprep.subr.mxu0 0.0
        %726 = vmatpush2.msra.mxu0 %v668
        %727 = vmatprep.subr.mxu0 0.0
        %728 = vmatpush2.msra.mxu0 %v667
        %729 = vmatprep.subr.mxu0 0.0
        %730 = vmatpush2.msra.mxu0 %v666
        %731 = vmatprep.subr.mxu0 0.0
        %732 = vmatpush2.msra.mxu0 %v665
        %733 = vmatprep.subr.mxu0 0.0
        %734 = vmatpush2.msra.mxu0 %v664
        %735 = vmatprep.subr.mxu0 0.0
        %736 = vmatpush2.msra.mxu0 %v663
        %737 = vmatprep.subr.mxu0 0.0
        %738 = vmatpush2.msra.mxu0 %v662
        %739 = vmatprep.subr.mxu0 0.0
        %740 = vmatpush2.msra.mxu0 %v661
        %741 = vmatprep.mubr.f32.mxu0 %v644
        %742 = vmatmul.mubr.f32.gmra.mxu0 %v643
        %v743 = vpop.f32.mrf.mxu0
        %v744 = vadd.f32 0.0, %v743
        %v745 = vpop.f32.mrf.mxu0
        %746 = vdwg.mxu0
        %v747 = vld [vmem:[%s5] sm:$0xff]
        %v748 = vld [vmem:[%s6] sm:$0xff]
        %750 = vset.pattern.permute.xlu0 0
        %751 = vperm.xlu0 %750, %v748
        %v752 = vpop.permute.xlu0 %751
        %vm754 = vcmask 64512
        %v756 = vsel %vm754, %v747, 0
        %758 = vmatprep.subr.mxu0 0.0
        %759 = vmatpush1.msra.mxu0 0.0
        %760 = vmatprep.subr.mxu0 0.0
        %761 = vmatpush1.msra.mxu0 0.0
        %762 = vmatprep.subr.mxu0 0.0
        %763 = vmatpush1.msra.mxu0 0.0
        %764 = vmatprep.subr.mxu0 0.0
        %765 = vmatpush1.msra.mxu0 0.0
        %766 = vmatprep.subr.mxu0 0.0
        %767 = vmatpush1.msra.mxu0 0.0
        %768 = vmatprep.subr.mxu0 0.0
        %769 = vmatpush1.msra.mxu0 0.0
        %770 = vmatprep.subr.mxu0 0.0
        %771 = vmatpush1.msra.mxu0 0.0
        %772 = vmatprep.subr.mxu0 0.0
        %773 = vmatpush1.msra.mxu0 0.0
        %774 = vmatprep.subr.mxu0 0.0
        %775 = vmatpush1.msra.mxu0 0.0
        %776 = vmatprep.subr.mxu0 0.0
        %777 = vmatpush1.msra.mxu0 0.0
        %778 = vmatprep.subr.mxu0 0.0
        %779 = vmatpush1.msra.mxu0 0.0
        %780 = vmatprep.subr.mxu0 0.0
        %781 = vmatpush1.msra.mxu0 0.0
        %782 = vmatprep.subr.mxu0 0.0
        %783 = vmatpush1.msra.mxu0 0.0
        %784 = vmatprep.subr.mxu0 0.0
        %785 = vmatpush1.msra.mxu0 0.0
        %786 = vmatprep.subr.mxu0 0.0
        %787 = vmatpush1.msra.mxu0 0.0
        %788 = vmatprep.subr.mxu0 0.0
        %789 = vmatpush1.msra.mxu0 %v744
        %790 = vmatprep.subr.mxu0 0.0
        %791 = vmatpush2.msra.mxu0 0.0
        %792 = vmatprep.subr.mxu0 0.0
        %793 = vmatpush2.msra.mxu0 0.0
        %794 = vmatprep.subr.mxu0 0.0
        %795 = vmatpush2.msra.mxu0 0.0
        %796 = vmatprep.subr.mxu0 0.0
        %797 = vmatpush2.msra.mxu0 0.0
        %798 = vmatprep.subr.mxu0 0.0
        %799 = vmatpush2.msra.mxu0 0.0
        %800 = vmatprep.subr.mxu0 0.0
        %801 = vmatpush2.msra.mxu0 0.0
        %802 = vmatprep.subr.mxu0 0.0
        %803 = vmatpush2.msra.mxu0 0.0
        %804 = vmatprep.subr.mxu0 0.0
        %805 = vmatpush2.msra.mxu0 0.0
        %806 = vmatprep.subr.mxu0 0.0
        %807 = vmatpush2.msra.mxu0 0.0
        %808 = vmatprep.subr.mxu0 0.0
        %809 = vmatpush2.msra.mxu0 0.0
        %810 = vmatprep.subr.mxu0 0.0
        %811 = vmatpush2.msra.mxu0 0.0
        %812 = vmatprep.subr.mxu0 0.0
        %813 = vmatpush2.msra.mxu0 0.0
        %814 = vmatprep.subr.mxu0 0.0
        %815 = vmatpush2.msra.mxu0 0.0
        %816 = vmatprep.subr.mxu0 0.0
        %817 = vmatpush2.msra.mxu0 0.0
        %818 = vmatprep.subr.mxu0 0.0
        %819 = vmatpush2.msra.mxu0 0.0
        %820 = vmatprep.subr.mxu0 0.0
        %821 = vmatpush2.msra.mxu0 0.0
        %822 = vmatprep.mubr.f32.mxu0 0.0
        %823 = vmatmul.mubr.f32.gmra.mxu0 %v756
        %v824 = vpop.f32.mrf.mxu0
        %v825 = vadd.f32 %v752, %v824
        %v826 = vpop.f32.mrf.mxu0
        %827 = vdwg.mxu0
        %vm828 = vcmask 523264
        %829 = vst.msk [vmem:[%s271] sm:$0xff] %vm828, %v825
        %s830 = sand.u32 %s181, 1
        %s831 = scalar_lea.sflag [#allocation4], %s830
        %s832 = sand.u32 %s181, 1
        %s833 = smul.addr %s832, 8
        %s834 = scalar_lea.vmem [#allocation3], %s833
        // Predicated region
        $region49: #{tpu_custom_call.1} parent=47 // pred_check
          %p835 = pneg %p191
        $region50: #{tpu_custom_call.1} parent=47 // pred_check_branch
          %837 = sbr.rel (%p835) target = $region52
        $region51: #{tpu_custom_call.1} parent=47 // pred_region
          %s839 = ssub.s32 128, 128
          %840 = vsyncadd %s831, %s839
          %s841 = smul.addr %s21, 128
          %s842 = scalar_lea.hbm %s7, %s841
          %s844 = sshll.u32 %s834, 4
          %s845 = int_to_ptr.vmem [resolvable:$true] %s844
          %847 = dma.vmem_to_hbm [thread:$0]  %s845, 128, %s842, %s831
        $region52: #{tpu_custom_call.1} parent=47 // pred_fallthru
          _
      $region48: #{tpu_custom_call.1} parent=5 // pred_fallthru
        _
      %p848 = scmp.le.s32.totalorder 2, %s16
      // Predicated region
      $region53: #{tpu_custom_call.1} parent=5 // pred_check
        %p849 = pneg %p848
      $region54: #{tpu_custom_call.1} parent=5 // pred_check_branch
        %851 = sbr.rel (%p849) target = $region56
      $region55: #{tpu_custom_call.1} parent=5 // pred_region
        %s852 = ssub.s32 %s16, 2
        // Predicated region
        $region57: #{tpu_custom_call.1} parent=55 // pred_check
          %p853 = pneg %p197
        $region58: #{tpu_custom_call.1} parent=55 // pred_check_branch
          %855 = sbr.rel (%p853) target = $region60
        $region59: #{tpu_custom_call.1} parent=55 // pred_region
          %s856 = sand.u32 %s182, 1
          %s857 = scalar_lea.sflag [#allocation4], %s856
          %s858 = sand.u32 %s182, 1
          %s859 = smul.addr %s858, 8
          %s860 = scalar_lea.vmem [#allocation3], %s859
          %861 = dma.done %s857, 128
        $region60: #{tpu_custom_call.1} parent=55 // pred_fallthru
          _
      $region56: #{tpu_custom_call.1} parent=5 // pred_fallthru
        _
    $region6: #{tpu_custom_call.1} parent=1 // loop_footer
      %s20 = sadd.s32 1, %s16
    $region7: #{tpu_custom_call.1} parent=1 // loop_footer_branch
      %15 = sbr.rel target = $region3
    $region8: #{tpu_custom_call.1} parent=1 // loop_exit
      _
    %862 = vsyncpa [#allocation4], 1
    %s863 = scalar_lea.sflag [#allocation4], 1
    %864 = vsyncpa %s863, 1

</llo_original>
